<compile_context>
chip_gen: v6e
topology: v6e:2x2x1
jax: 0.10.0
libtpu: 0.0.40
codegen_flags: <defaults>
</compile_context>

<pallas_src>
import functools

import jax
import jax.numpy as jnp
from jax import lax
from jax.experimental import pallas as pl
from jax.experimental.pallas import tpu as pltpu


def _round_up(x, m):
    return ((x + m - 1) // m) * m


def _masked_loss_kernel(o_ref, p_ref, m_ref, acc_ref, *,
                        steps, nblocks, block_rows, total_rows, has_surplus):
    i = pl.program_id(1)
    b = pl.program_id(0) * steps + i

    # Zero the (resident) per-split accumulator on the first batch step.
    @pl.when(i == 0)
    def _():
        acc_ref[...] = jnp.zeros_like(acc_ref)

    def compute():
        o = o_ref[...].astype(jnp.float32)      # [TR, 128]  fully lane-dense
        p = p_ref[...].astype(jnp.float32)
        m = m_ref[...].astype(jnp.float32)
        d = (o - p) * m
        if nblocks * block_rows != total_rows:
            # Ragged final block: rows beyond `total_rows` hold unspecified
            # padding — zero both the diff and the mask before accumulating.
            row = b * block_rows + lax.broadcasted_iota(
                jnp.int32, (block_rows, 128), 0)
            valid = row < total_rows
            d = jnp.where(valid, d, 0.0)
            m = jnp.where(valid, m, 0.0)
        # Sublane-axis reductions -> [1,128] each, merged into ONE fused add.
        partial = jnp.concatenate(
            [jnp.sum(d * d, axis=0, keepdims=True),
             jnp.sum(m, axis=0, keepdims=True)],
            axis=0)                              # [2, 128]
        acc_ref[0] += partial

    if has_surplus:
        # Last split may have a few surplus grid steps (index_map clamps the
        # DMA to the last real block); skip their accumulation.
        pl.when(b < nblocks)(compute)
    else:
        compute()


def masked_loss(outputs, props, loss_mask, properties, *,
                nsplit=1, vmem_budget_bytes=16 * 1024 * 1024,
                max_block_rows=None):
    """Reproduces MaskedLoss.forward semantics.

    outputs, props, loss_mask: [B, P] arrays (P == len(properties)); float32
    or bfloat16 (upcast to f32 inside the kernel).  `nsplit=2` shards the
    batch reduction across the two TensorCores of a v7x chip.
    Returns: dict {property_name: scalar float32 loss}.
    """
    B, P = outputs.shape
    assert props.shape == (B, P) and loss_mask.shape == (B, P)
    assert len(properties) == P
    assert 1 <= P <= 128

    if loss_mask.dtype == jnp.bool_:
        loss_mask = loss_mask.astype(jnp.float32)
    # NOTE: a binary mask (0/1) is exactly representable in bf16 — callers can
    # pass bf16 inputs to halve HBM traffic on this memory-bound kernel.

    p_pad = int(pl.next_power_of_2(P))           # p_pad divides 128
    q = 128 // p_pad                             # batch rows per 128-lane row
    b_pad = _round_up(B, q)

    def prep(x):
        # Free when no padding is needed: a contiguous row-major reshape only
        # (no transpose / relayout).  The zero-pad (mask rows = 0) costs one
        # extra pass and only triggers for unaligned B / non-pow2 P.
        if (b_pad, p_pad) != (B, P):
            x = jnp.pad(x, ((0, b_pad - B), (0, p_pad - P)))
        return x.reshape(b_pad * p_pad // 128, 128)

    o2, p2, m2 = prep(outputs), prep(props), prep(loss_mask)
    R = o2.shape[0]

    # Tile rows: ~1.2-1.7 MiB per input tile (HBM-roofline plateau), sized so
    # 3 inputs x 2 pipeline buffers + ~4 f32 element-wise temporaries fit the
    # budget (safe on v5e's 16 MiB scoped VMEM given the 32 MiB limit below).
    sum_item = sum(x.dtype.itemsize for x in (o2, p2, m2))
    bytes_per_row = 2 * 128 * sum_item + 4 * 128 * 4
    tr = max(8, (vmem_budget_bytes // bytes_per_row) // 8 * 8)
    if max_block_rows is not None:
        tr = max(8, min(tr, (max_block_rows // 8) * 8))
    tr = min(tr, _round_up(R, 8))

    nblocks = int(pl.cdiv(R, tr))
    nsplit = max(1, min(int(nsplit), nblocks))
    steps = int(pl.cdiv(nblocks, nsplit))
    has_surplus = nsplit * steps != nblocks

    in_spec = pl.BlockSpec(
        (tr, 128),
        lambda s, i: (jnp.minimum(s * steps + i, nblocks - 1), 0))

    kernel = functools.partial(
        _masked_loss_kernel, steps=steps, nblocks=nblocks, block_rows=tr,
        total_rows=R, has_surplus=has_surplus)

    bytes_accessed = int(sum(x.size * x.dtype.itemsize for x in (o2, p2, m2))
                         + nsplit * 2 * 128 * 4)

    acc = pl.pallas_call(
        kernel,
        out_shape=jax.ShapeDtypeStruct((nsplit, 2, 128), jnp.float32),
        grid=(nsplit, steps),
        in_specs=[in_spec, in_spec, in_spec],
        out_specs=pl.BlockSpec((1, 2, 128), lambda s, i: (s, 0, 0)),
        compiler_params=pltpu.CompilerParams(
            dimension_semantics=("parallel", "arbitrary"),
            vmem_limit_bytes=32 * 1024 * 1024),
        cost_estimate=pl.CostEstimate(
            flops=5 * R * 128, transcendentals=0,
            bytes_accessed=bytes_accessed),
    )(o2, p2, m2)

    # Combine split partials, fold 128 lanes -> properties, final divide.
    acc = acc.sum(axis=0)                                   # [2, 128]
    sq_prop = acc[0].reshape(q, p_pad).sum(axis=0)[:P]      # lane j -> j % p_pad
    m_prop = acc[1].reshape(q, p_pad).sum(axis=0)[:P]
    denom = jnp.where(m_prop == 0.0, jnp.float32(1.0), m_prop)
    per_prop = sq_prop / denom
    return {prop: per_prop[i] for i, prop in enumerate(properties)}


def _reference(outputs, props, loss_mask, properties):
    # Pure-JAX reference mirroring the PyTorch loop.
    outputs = outputs.astype(jnp.float32)
    props = props.astype(jnp.float32)
    loss_mask = loss_mask.astype(jnp.float32)
    ref = {}
    for i, prop in enumerate(properties):
        d = (outputs[:, i] - props[:, i]) * loss_mask[:, i]
        s = jnp.sum(d ** 2.0)
        msum = jnp.sum(loss_mask[:, i])
        ref[prop] = s / jnp.where(msum == 0.0, 1.0, msum)
    return ref


if __name__ == "__main__":
    # ---- Test 1: aligned batch (zero-copy path), f32, zero-mask column. ----
    key = jax.random.PRNGKey(0)
    k1, k2, k3 = jax.random.split(key, 3)
    properties = ["prop_a", "prop_b", "prop_c", "prop_d"]
    B, P = 256, len(properties)

    outputs = jax.random.normal(k1, (B, P), dtype=jnp.float32)
    props = jax.random.normal(k2, (B, P), dtype=jnp.float32)
    loss_mask = (jax.random.uniform(k3, (B, P)) > 0.5).astype(jnp.float32)
    loss_mask = loss_mask.at[:, 2].set(0.0)      # sum(mask)==0 branch

    loss = masked_loss(outputs, props, loss_mask, properties)
    jax.block_until_ready(loss)
    ref = _reference(outputs, props, loss_mask, properties)
    for prop in properties:
        assert jnp.allclose(loss[prop], ref[prop], atol=1e-4, rtol=1e-4), (
            prop, loss[prop], ref[prop])

    # ---- Test 2: unaligned B, non-pow2 P, bf16 inputs, nsplit=2, ragged. ----
    props3 = ["x", "y", "z"]
    B2, P2 = 300, len(props3)
    kb1, kb2, kb3 = jax.random.split(jax.random.PRNGKey(1), 3)
    out2 = jax.random.normal(kb1, (B2, P2), dtype=jnp.float32).astype(jnp.bfloat16)
    prp2 = jax.random.normal(kb2, (B2, P2), dtype=jnp.float32).astype(jnp.bfloat16)
    msk2 = (jax.random.uniform(kb3, (B2, P2)) > 0.3).astype(jnp.bfloat16)

    loss2 = masked_loss(out2, prp2, msk2, props3, nsplit=2, max_block_rows=8)
    jax.block_until_ready(loss2)
    ref2 = _reference(out2, prp2, msk2, props3)
    for prop in props3:
        assert jnp.allclose(loss2[prop], ref2[prop], atol=1e-3, rtol=1e-3), (
            prop, loss2[prop], ref2[prop])

    # ---- Test 3: uneven split (surplus grid step) + ragged final block. ----
    B3 = 700
    kc1, kc2, kc3 = jax.random.split(jax.random.PRNGKey(2), 3)
    out3 = jax.random.normal(kc1, (B3, P2), dtype=jnp.float32)
    prp3 = jax.random.normal(kc2, (B3, P2), dtype=jnp.float32)
    msk3 = (jax.random.uniform(kc3, (B3, P2)) > 0.4).astype(jnp.float32)

    loss3 = masked_loss(out3, prp3, msk3, props3, nsplit=2, max_block_rows=8)
    jax.block_until_ready(loss3)
    ref3 = _reference(out3, prp3, msk3, props3)
    for prop in props3:
        assert jnp.allclose(loss3[prop], ref3[prop], atol=1e-4, rtol=1e-4), (
            prop, loss3[prop], ref3[prop])

    print("KERNEL_OK")
</pallas_src>

<mosaic_0001>
module attributes {stable_mosaic.version = 11 : i64} {
  func.func @_masked_loss_kernel(%arg0: i32, %arg1: i32, %arg2: memref<8x128xf32, #tpu.memory_space<vmem>>, %arg3: memref<8x128xf32, #tpu.memory_space<vmem>>, %arg4: memref<8x128xf32, #tpu.memory_space<vmem>>, %arg5: memref<1x2x128xf32, #tpu.memory_space<vmem>>) attributes {dimension_semantics = [#tpu.dimension_semantics<parallel>, #tpu.dimension_semantics<arbitrary>], iteration_bounds = array<i64: 1, 1>, scalar_prefetch = 0 : i64, scratch_operands = 0 : i64, tpu.core_type = #tpu.core_type<tc>, window_params = [{transform_indices = @transform_0, window_bounds = array<i64: 8, 128>}, {transform_indices = @transform_1, window_bounds = array<i64: 8, 128>}, {transform_indices = @transform_2, window_bounds = array<i64: 8, 128>}, {transform_indices = @transform_3, window_bounds = array<i64: 1, 2, 128>}]} {
    %c0_i32 = arith.constant 0 : i32
    %0 = arith.cmpi eq, %arg1, %c0_i32 : i32
    %1 = arith.extui %0 : i1 to i32
    %c0_i32_0 = arith.constant 0 : i32
    %2 = arith.cmpi ne, %1, %c0_i32_0 : i32
    scf.if %2 {
      %cst_13 = arith.constant 0.000000e+00 : f32
      %20 = vector.broadcast %cst_13 : f32 to vector<1x2x128xf32>
      %c0_14 = arith.constant 0 : index
      %c0_15 = arith.constant 0 : index
      %c0_16 = arith.constant 0 : index
      %21 = vector.load %arg5[%c0_14, %c0_15, %c0_16] : memref<1x2x128xf32, #tpu.memory_space<vmem>>, vector<1x2x128xf32>
      tpu.vector_store %arg5[%c0_14, %c0_15, %c0_16], %20 {strides = array<i32>} : memref<1x2x128xf32, #tpu.memory_space<vmem>>, vector<1x2x128xf32>,
    } else {
    }
    %c0 = arith.constant 0 : index
    %c0_1 = arith.constant 0 : index
    %3 = vector.load %arg2[%c0, %c0_1] : memref<8x128xf32, #tpu.memory_space<vmem>>, vector<8x128xf32>
    %c0_2 = arith.constant 0 : index
    %c0_3 = arith.constant 0 : index
    %4 = vector.load %arg3[%c0_2, %c0_3] : memref<8x128xf32, #tpu.memory_space<vmem>>, vector<8x128xf32>
    %c0_4 = arith.constant 0 : index
    %c0_5 = arith.constant 0 : index
    %5 = vector.load %arg4[%c0_4, %c0_5] : memref<8x128xf32, #tpu.memory_space<vmem>>, vector<8x128xf32>
    %6 = arith.subf %3, %4 : vector<8x128xf32>
    %7 = arith.mulf %6, %5 : vector<8x128xf32>
    %8 = arith.mulf %7, %7 : vector<8x128xf32>
    %cst = arith.constant dense<0.000000e+00> : vector<128xf32>
    %9 = vector.multi_reduction <add>, %8, %cst [0] : vector<8x128xf32> to vector<128xf32>
    %10 = vector.shape_cast %9 : vector<128xf32> to vector<1x128xf32>
    %cst_6 = arith.constant dense<0.000000e+00> : vector<128xf32>
    %11 = vector.multi_reduction <add>, %5, %cst_6 [0] : vector<8x128xf32> to vector<128xf32>
    %12 = vector.shape_cast %11 : vector<128xf32> to vector<1x128xf32>
    %13 = tpu.concatenate %10, %12 in 0 : vector<1x128xf32>, vector<1x128xf32> -> vector<2x128xf32>
    %c0_7 = arith.constant 0 : index
    %c0_8 = arith.constant 0 : index
    %c0_9 = arith.constant 0 : index
    %14 = vector.load %arg5[%c0_7, %c0_8, %c0_9] : memref<1x2x128xf32, #tpu.memory_space<vmem>>, vector<1x2x128xf32>
    %15 = vector.shape_cast %14 : vector<1x2x128xf32> to vector<2x128xf32>
    %16 = arith.addf %15, %13 : vector<2x128xf32>
    %c0_10 = arith.constant 0 : index
    %c0_11 = arith.constant 0 : index
    %c0_12 = arith.constant 0 : index
    %17 = vector.load %arg5[%c0_10, %c0_11, %c0_12] : memref<1x2x128xf32, #tpu.memory_space<vmem>>, vector<1x2x128xf32>
    %18 = vector.shape_cast %17 : vector<1x2x128xf32> to vector<2x128xf32>
    %19 = vector.shape_cast %16 : vector<2x128xf32> to vector<1x2x128xf32>
    tpu.vector_store %arg5[%c0_10, %c0_11, %c0_12], %19 {strides = array<i32>} : memref<1x2x128xf32, #tpu.memory_space<vmem>>, vector<1x2x128xf32>,
    return
  }
  func.func @transform_0(%arg0: i32, %arg1: i32) -> (i32, i32) {
    %c1_i32 = arith.constant 1 : i32
    %0 = arith.muli %arg0, %c1_i32 : i32
    %1 = arith.addi %0, %arg1 : i32
    %c0_i32 = arith.constant 0 : i32
    %2 = arith.minsi %1, %c0_i32 : i32
    %c0_i32_0 = arith.constant 0 : i32
    %c0_i32_1 = arith.constant 0 : i32
    return %2, %c0_i32_0 : i32, i32
  }
  func.func @transform_1(%arg0: i32, %arg1: i32) -> (i32, i32) {
    %c1_i32 = arith.constant 1 : i32
    %0 = arith.muli %arg0, %c1_i32 : i32
    %1 = arith.addi %0, %arg1 : i32
    %c0_i32 = arith.constant 0 : i32
    %2 = arith.minsi %1, %c0_i32 : i32
    %c0_i32_0 = arith.constant 0 : i32
    %c0_i32_1 = arith.constant 0 : i32
    return %2, %c0_i32_0 : i32, i32
  }
  func.func @transform_2(%arg0: i32, %arg1: i32) -> (i32, i32) {
    %c1_i32 = arith.constant 1 : i32
    %0 = arith.muli %arg0, %c1_i32 : i32
    %1 = arith.addi %0, %arg1 : i32
    %c0_i32 = arith.constant 0 : i32
    %2 = arith.minsi %1, %c0_i32 : i32
    %c0_i32_0 = arith.constant 0 : i32
    %c0_i32_1 = arith.constant 0 : i32
    return %2, %c0_i32_0 : i32, i32
  }
  func.func @transform_3(%arg0: i32, %arg1: i32) -> (i32, i32, i32) {
    %c0_i32 = arith.constant 0 : i32
    %c0_i32_0 = arith.constant 0 : i32
    %c0_i32_1 = arith.constant 0 : i32
    return %arg0, %c0_i32, %c0_i32_0 : i32, i32, i32
  }
}

</mosaic_0001>

<llo_original>
// kernel: tpu_custom_call.1
$region0: #{tpu_custom_call.1}
  #allocation0 [shape = 'u32[]', space=smem, size = 0x4, offset = 0x4, fixed_abs, tag = 'smem constant byte address 0x4 - core index']
  #allocation1 [shape = 'u32[144,128]{1,0:T(1,128)}', space=vmem, size = 0x12000, scoped, tag = 'internal scratch']
  %s0 = inlined_call_operand.hbm [shape: f32[8,128], index: 0, kind: input, shape index: {}]
  %s1 = inlined_call_operand.hbm [shape: f32[8,128], index: 1, kind: input, shape index: {}]
  %s2 = inlined_call_operand.hbm [shape: f32[8,128], index: 2, kind: input, shape index: {}]
  %s3 = inlined_call_operand.hbm [shape: f32[1,2,128], index: 3, kind: output, shape index: {}]
  %s4 = sld [smem:[#allocation0]]
  $region38: #{tpu_custom_call.1} parent=0
    _
  %s6 = ssub.s32 1, %s4
  %s7 = scalar_select 0, %s6, %s4
  $region1: #{tpu_custom_call.1} parent=0
    #allocation2 [shape = 'u8[4096]{0}', space=vmem, size = 0x1000, scoped, tag = 'input window, operand 0, single buffered']
    #allocation3 [shape = 's32[1]{0}', space=sflag, size = 0x4, scoped, tag = 'scoped memory for tpu_custom_call.1']
    #allocation4 [shape = 's32[1]{0}', space=sflag, size = 0x4, scoped, tag = 'scoped memory for tpu_custom_call.1']
    #allocation5 [shape = 'u8[4096]{0}', space=vmem, size = 0x1000, scoped, tag = 'input window, operand 1, single buffered']
    #allocation6 [shape = 's32[1]{0}', space=sflag, size = 0x4, scoped, tag = 'scoped memory for tpu_custom_call.1']
    #allocation7 [shape = 'u8[4096]{0}', space=vmem, size = 0x1000, scoped, tag = 'input window, operand 2, single buffered']
    #allocation8 [shape = 'u8[1024]{0}', space=vmem, size = 0x400, scoped, tag = 'output window, operand 0, single buffered']
    %8 = vsyncpa [#allocation3], 0
    %9 = vsyncpa [#allocation6], 0
    %10 = vsyncpa [#allocation4], 0
    // Predicated region
    $region2: #{tpu_custom_call.1} parent=1 // pred_check
      _
    $region3: #{tpu_custom_call.1} parent=1 // pred_check_branch
      %12 = sbr.rel (0) target = $region5
    $region4: #{tpu_custom_call.1} parent=1 // pred_region
      %s13 = sadd.s32 0, 0
      %p14 = scmp.lt.s32.totalorder %s13, 0
      %s15 = scalar_select %p14, %s13, 0
      %s17 = ssub.s32 128, 128
      %18 = vsyncadd [#allocation3], %s17
      %s19 = smul.addr %s15, 128
      %s20 = scalar_lea.hbm %s0, %s19
      %s22 = sshll.u32 [#allocation2], 4
      %s23 = int_to_ptr.vmem [resolvable:$true] %s22
      %25 = dma.hbm_to_vmem [thread:$0]  %s20, 128, %s23, [#allocation3]
    $region5: #{tpu_custom_call.1} parent=1 // pred_fallthru
      _
    // Predicated region
    $region6: #{tpu_custom_call.1} parent=1 // pred_check
      _
    $region7: #{tpu_custom_call.1} parent=1 // pred_check_branch
      %27 = sbr.rel (0) target = $region9
    $region8: #{tpu_custom_call.1} parent=1 // pred_region
      %s28 = sadd.s32 0, 0
      %p29 = scmp.lt.s32.totalorder %s28, 0
      %s30 = scalar_select %p29, %s28, 0
      %s32 = ssub.s32 128, 128
      %33 = vsyncadd [#allocation6], %s32
      %s34 = smul.addr %s30, 128
      %s35 = scalar_lea.hbm %s1, %s34
      %s37 = sshll.u32 [#allocation5], 4
      %s38 = int_to_ptr.vmem [resolvable:$true] %s37
      %40 = dma.hbm_to_vmem [thread:$0]  %s35, 128, %s38, [#allocation6]
    $region9: #{tpu_custom_call.1} parent=1 // pred_fallthru
      _
    // Predicated region
    $region10: #{tpu_custom_call.1} parent=1 // pred_check
      _
    $region11: #{tpu_custom_call.1} parent=1 // pred_check_branch
      %42 = sbr.rel (0) target = $region13
    $region12: #{tpu_custom_call.1} parent=1 // pred_region
      %s43 = sadd.s32 0, 0
      %p44 = scmp.lt.s32.totalorder %s43, 0
      %s45 = scalar_select %p44, %s43, 0
      %s47 = ssub.s32 128, 128
      %48 = vsyncadd [#allocation6], %s47
      %s49 = smul.addr %s45, 128
      %s50 = scalar_lea.hbm %s2, %s49
      %s52 = sshll.u32 [#allocation7], 4
      %s53 = int_to_ptr.vmem [resolvable:$true] %s52
      %55 = dma.hbm_to_vmem [thread:$0]  %s50, 128, %s53, [#allocation6]
    $region13: #{tpu_custom_call.1} parent=1 // pred_fallthru
      _
    // Predicated region
    $region14: #{tpu_custom_call.1} parent=1 // pred_check
      _
    $region15: #{tpu_custom_call.1} parent=1 // pred_check_branch
      %57 = sbr.rel (0) target = $region17
    $region16: #{tpu_custom_call.1} parent=1 // pred_region
      %58 = dma.done [#allocation3], 128
    $region17: #{tpu_custom_call.1} parent=1 // pred_fallthru
      _
    // Predicated region
    $region18: #{tpu_custom_call.1} parent=1 // pred_check
      _
    $region19: #{tpu_custom_call.1} parent=1 // pred_check_branch
      %60 = sbr.rel (0) target = $region21
    $region20: #{tpu_custom_call.1} parent=1 // pred_region
      %61 = dma.done [#allocation6], 128
    $region21: #{tpu_custom_call.1} parent=1 // pred_fallthru
      _
    // Predicated region
    $region22: #{tpu_custom_call.1} parent=1 // pred_check
      _
    $region23: #{tpu_custom_call.1} parent=1 // pred_check_branch
      %63 = sbr.rel (0) target = $region25
    $region24: #{tpu_custom_call.1} parent=1 // pred_region
      %64 = dma.done [#allocation6], 128
    $region25: #{tpu_custom_call.1} parent=1 // pred_fallthru
      _
    %s65 = sadd.s32 0, 0
    %p66 = scmp.lt.s32.totalorder %s65, 0
    %s67 = scalar_select %p66, %s65, 0
    %s68 = sadd.s32 0, 0
    %p69 = scmp.lt.s32.totalorder %s68, 0
    %s70 = scalar_select %p69, %s68, 0
    %s71 = sadd.s32 0, 0
    %p72 = scmp.lt.s32.totalorder %s71, 0
    %s73 = scalar_select %p72, %s71, 0
    %p74 = scmp.eq.s32.totalorder 0, 0
    // Predicated region
    $region26: #{tpu_custom_call.1} parent=1 // pred_check
      %p75 = pneg %p74
    $region27: #{tpu_custom_call.1} parent=1 // pred_check_branch
      %77 = sbr.rel (%p75) target = $region29
    $region28: #{tpu_custom_call.1} parent=1 // pred_region
      %78 = vst [vmem:[#allocation8] sm:$0x3] 0.0
    $region29: #{tpu_custom_call.1} parent=1 // pred_fallthru
      _
    %v79 = vld [vmem:[#allocation2] sm:$0xff]
    %v80 = vld [vmem:[#allocation5] sm:$0xff]
    %v81 = vld [vmem:[#allocation7] sm:$0xff]
    %v82 = vsub.f32 %v79, %v80
    %v83 = vmul.f32 %v82, %v81
    %v84 = vmul.f32 %v83, %v83
    %v85 = vrot.slane %v84, 4
    %v86 = vadd.f32 %v84, %v85
    %v87 = vrot.slane %v86, 2
    %v88 = vadd.f32 %v86, %v87
    %v89 = vrot.slane %v88, 1
    %v90 = vadd.f32 %v88, %v89
    %v91 = vrot.slane %v81, 4
    %v92 = vadd.f32 %v81, %v91
    %v93 = vrot.slane %v92, 2
    %v94 = vadd.f32 %v92, %v93
    %v95 = vrot.slane %v94, 1
    %v96 = vadd.f32 %v94, %v95
    %vm97 = vcmask 1040384
    %v98 = vsel %vm97, %v90, %v96
    %v99 = vld [vmem:[#allocation8] sm:$0x3]
    %v100 = vadd.f32 %v99, %v98
    %101 = vst [vmem:[#allocation8] sm:$0x3] %v100
    // Predicated region
    $region30: #{tpu_custom_call.1} parent=1 // pred_check
      _
    $region31: #{tpu_custom_call.1} parent=1 // pred_check_branch
      %103 = sbr.rel (0) target = $region33
    $region32: #{tpu_custom_call.1} parent=1 // pred_region
      %s105 = ssub.s32 32, 32
      %106 = vsyncadd [#allocation4], %s105
      %s108 = sshll.u32 [#allocation8], 4
      %s109 = int_to_ptr.vmem [resolvable:$true] %s108
      %111 = dma.vmem_to_hbm [thread:$0]  %s109, 32, %s3, [#allocation4]
    $region33: #{tpu_custom_call.1} parent=1 // pred_fallthru
      _
    // Predicated region
    $region34: #{tpu_custom_call.1} parent=1 // pred_check
      _
    $region35: #{tpu_custom_call.1} parent=1 // pred_check_branch
      %113 = sbr.rel (0) target = $region37
    $region36: #{tpu_custom_call.1} parent=1 // pred_region
      %114 = dma.done [#allocation4], 32
    $region37: #{tpu_custom_call.1} parent=1 // pred_fallthru
      _
    %115 = vsyncpa [#allocation3], 1
    %116 = vsyncpa [#allocation6], 1
    %117 = vsyncpa [#allocation4], 1

</llo_original>
